<compile_context>
chip_gen: v7x
topology: tpu7x:2x2x1
jax: 0.10.0
libtpu: 0.0.40
codegen_flags: <defaults>
</compile_context>

<pallas_src>
import jax
import jax.numpy as jnp
from jax.experimental import pallas as pl
from jax.experimental.pallas import tpu as pltpu


# Per-input f32 block bytes; ~16-17 MiB total in flight with double buffering.
# TODO(synk): per-chip tuning -- 6-8 MiB on v7x (3.2 TB/s HBM), 2 MiB is
# already enough on v5e; 4 MiB is a good single default across v5e/v6e/v7x.
_MAX_BLOCK_BYTES = 4 * 1024 * 1024


def _plan_layout(n):
    """Pick (lanes, tile_rows, rows, pad_elems) for a length-n flat reduction."""
    lanes = 128
    for cand in (1024, 512, 256):
        if n % cand == 0:
            lanes = cand
            break
    pad = (-n) % lanes                     # only to complete the last row
    rows = (n + pad) // lanes
    max_tile_rows = max(8, _MAX_BLOCK_BYTES // (4 * lanes))
    if rows <= max_tile_rows:
        tile_rows = rows                   # single block covers full rows dim
    else:
        tile_rows = None
        for cand in (8192, 4096, 2048, 1024, 512, 256, 128):
            if cand <= max_tile_rows and rows % cand == 0:
                tile_rows = cand
                break
        if tile_rows is None:
            # Ragged rows: keep a near-maximal tile, mask the tail in-kernel.
            tile_rows = max(8, (max_tile_rows // 8) * 8)
    return lanes, tile_rows, rows, pad


def _make_loss_kernel(scale_sse, scale_bce, tile_rows, lanes, acc_rows,
                      valid_rows, ragged):
    # Keep scales as plain Python floats: they fold into the kernel as
    # compile-time constants (jnp scalars here -> captured-constant error).
    scale_sse = float(scale_sse)
    scale_bce = float(scale_bce)

    def kernel(a_ref, b_ref, y_ref, z_ref, out_ref, acc_ref):
        i = pl.program_id(0)
        last = pl.num_programs(0) - 1

        def partial(masked):
            d = a_ref[...].astype(jnp.float32) - b_ref[...].astype(jnp.float32)
            sq = d * d
            if masked:
                # Tail tile: OOB rows hold undefined data (possibly NaN/Inf);
                # keep this a select (vsel), never a multiply-by-mask.
                row_ids = jax.lax.broadcasted_iota(
                    jnp.int32, (tile_rows, lanes), 0) + i * tile_rows
                sq = jnp.where(row_ids < valid_rows, sq, 0.0)
            if tile_rows > acc_rows:
                # Sublane-grouped VALU add tree down to (acc_rows, lanes);
                # the cross-lane reduce happens exactly once in the epilogue.
                sq = sq.reshape(tile_rows // acc_rows, acc_rows, lanes).sum(axis=0)
            return sq

        if ragged:
            # _plan_layout guarantees num_tiles >= 2 when ragged, so the tail
            # tile is never step 0.
            @pl.when(i == 0)
            def _():
                acc_ref[...] = partial(False)

            @pl.when(jnp.logical_and(i != 0, i != last))
            def _():
                acc_ref[...] += partial(False)

            @pl.when(i == last)
            def _():
                acc_ref[...] += partial(True)
        else:
            p = partial(False)

            @pl.when(i == 0)
            def _():
                acc_ref[...] = p          # write-on-first-step (no zero+acc)

            @pl.when(i != 0)
            def _():
                acc_ref[...] += p

        @pl.when(i == last)
        def _():
            sse = jnp.sum(acc_ref[...])
            # BCEWithLogits (stable): max(x,0) - x*z + log1p(exp(-|x|))
            x = y_ref[...].astype(jnp.float32)
            z = z_ref[...].astype(jnp.float32)
            bce = jnp.sum(
                jnp.maximum(x, 0.0) - x * z + jnp.log1p(jnp.exp(-jnp.abs(x))))
            out_ref[0, 0] = scale_sse * sse + scale_bce * bce

    return kernel


def custom_loss(teacher_features, features, y_pred, labels, weights=(1.0, 1.0)):
    n = int(teacher_features.size)        # MSE denominator
    m = int(y_pred.size)                  # BCE denominator

    lanes, tile_rows, rows, pad = _plan_layout(n)

    tf_flat = teacher_features.reshape(-1)
    f_flat = features.reshape(-1)
    if pad:
        # Only to complete the last 128-lane row; identical zero padding on
        # both inputs adds exactly 0 to the squared-error sum.
        tf_flat = jnp.pad(tf_flat, (0, pad))
        f_flat = jnp.pad(f_flat, (0, pad))
    a2d = tf_flat.reshape(rows, lanes)
    b2d = f_flat.reshape(rows, lanes)

    num_tiles = pl.cdiv(rows, tile_rows)
    ragged = (rows % tile_rows) != 0
    acc_rows = 8 if tile_rows % 8 == 0 else tile_rows

    y_shape = tuple(y_pred.shape)
    y_rank = len(y_shape)

    kernel = _make_loss_kernel(
        float(weights[0]) / n, float(weights[1]) / m,
        tile_rows, lanes, acc_rows, rows, ragged)

    feat_bytes = a2d.dtype.itemsize
    cost = pl.CostEstimate(
        flops=3 * n + 5 * m,
        transcendentals=2 * m,
        bytes_accessed=2 * feat_bytes * n + 8 * m + 4)

    out = pl.pallas_call(
        kernel,
        out_shape=jax.ShapeDtypeStruct((1, 1), jnp.float32),
        grid_spec=pltpu.PrefetchScalarGridSpec(
            num_scalar_prefetch=0,
            grid=(num_tiles,),
            in_specs=[
                pl.BlockSpec((tile_rows, lanes), lambda i: (i, 0)),
                pl.BlockSpec((tile_rows, lanes), lambda i: (i, 0)),
                # Tiny classification tensors: full-array resident blocks.
                pl.BlockSpec(y_shape, lambda i: (0,) * y_rank),
                pl.BlockSpec(y_shape, lambda i: (0,) * y_rank),
            ],
            out_specs=pl.BlockSpec(
                (1, 1), lambda i: (0, 0),
                memory_space=pltpu.MemorySpace.SMEM),
            scratch_shapes=[pltpu.VMEM((acc_rows, lanes), jnp.float32)],
        ),
        compiler_params=pltpu.CompilerParams(
            dimension_semantics=("arbitrary",),
            vmem_limit_bytes=48 * 1024 * 1024,
        ),
        cost_estimate=cost,
    )(a2d, b2d, y_pred, labels)
    return out[0, 0]


if __name__ == "__main__":
    key = jax.random.PRNGKey(0)
    k1, k2, k3, k4 = jax.random.split(key, 4)

    # Small shapes consistent with the forward pass:
    #   teacher_features / features : (B, C, H, W) = (2, 4, 16, 16)
    #   y_pred / labels             : (B, num_classes) = (2, 11)
    B, C, H, W = 2, 4, 16, 16
    NCLS = 11

    teacher_features = jax.random.normal(k1, (B, C, H, W), dtype=jnp.float32)
    features = jax.random.normal(k2, (B, C, H, W), dtype=jnp.float32)
    y_pred = jax.random.normal(k3, (B, NCLS), dtype=jnp.float32)
    labels = (jax.random.uniform(k4, (B, NCLS)) > 0.5).astype(jnp.float32)

    loss = custom_loss(teacher_features, features, y_pred, labels,
                       weights=(1.0, 1.0))
    loss = jax.block_until_ready(loss)

    # Reference check in plain JAX (same math as torch MSELoss + BCEWithLogitsLoss).
    mse_ref = jnp.mean((teacher_features.reshape(-1) - features.reshape(-1)) ** 2)
    x, z = y_pred, labels
    bce_ref = jnp.mean(jnp.maximum(x, 0.0) - x * z + jnp.log1p(jnp.exp(-jnp.abs(x))))
    ref = mse_ref + bce_ref
    assert jnp.allclose(loss, ref, rtol=1e-5, atol=1e-5), (loss, ref)

    print("KERNEL_OK")
</pallas_src>

<mosaic_0001>
module attributes {stable_mosaic.version = 11 : i64} {
  func.func @kernel(%arg0: i32, %arg1: memref<2x1024xf32, #tpu.memory_space<vmem>>, %arg2: memref<2x1024xf32, #tpu.memory_space<vmem>>, %arg3: memref<2x11xf32, #tpu.memory_space<vmem>>, %arg4: memref<2x11xf32, #tpu.memory_space<vmem>>, %arg5: memref<1x1xf32, #tpu.memory_space<smem>>, %arg6: memref<2x1024xf32, #tpu.memory_space<vmem>>) attributes {dimension_semantics = [#tpu.dimension_semantics<arbitrary>], iteration_bounds = array<i64: 1>, scalar_prefetch = 0 : i64, scratch_operands = 1 : i64, tpu.core_type = #tpu.core_type<tc>, window_params = [{transform_indices = @transform_0, window_bounds = array<i64: 2, 1024>}, {transform_indices = @transform_1, window_bounds = array<i64: 2, 1024>}, {pipeline_mode = #tpu.pipeline_mode<synchronous>, transform_indices = @transform_2, window_bounds = array<i64: 2, 11>}, {pipeline_mode = #tpu.pipeline_mode<synchronous>, transform_indices = @transform_3, window_bounds = array<i64: 2, 11>}, {transform_indices = @transform_4, window_bounds = array<i64: 1, 1>}]} {
    %c0 = arith.constant 0 : index
    %c0_0 = arith.constant 0 : index
    %0 = vector.load %arg1[%c0, %c0_0] : memref<2x1024xf32, #tpu.memory_space<vmem>>, vector<2x1024xf32>
    %c0_1 = arith.constant 0 : index
    %c0_2 = arith.constant 0 : index
    %1 = vector.load %arg2[%c0_1, %c0_2] : memref<2x1024xf32, #tpu.memory_space<vmem>>, vector<2x1024xf32>
    %2 = arith.subf %0, %1 : vector<2x1024xf32>
    %3 = arith.mulf %2, %2 : vector<2x1024xf32>
    %c0_i32 = arith.constant 0 : i32
    %4 = arith.cmpi eq, %arg0, %c0_i32 : i32
    %5 = arith.extui %4 : i1 to i32
    %c0_i32_3 = arith.constant 0 : i32
    %6 = arith.cmpi ne, %5, %c0_i32_3 : i32
    scf.if %6 {
      %c0_8 = arith.constant 0 : index
      %c0_9 = arith.constant 0 : index
      %13 = vector.load %arg6[%c0_8, %c0_9] : memref<2x1024xf32, #tpu.memory_space<vmem>>, vector<2x1024xf32>
      tpu.vector_store %arg6[%c0_8, %c0_9], %3 {strides = array<i32>} : memref<2x1024xf32, #tpu.memory_space<vmem>>, vector<2x1024xf32>,
    } else {
    }
    %c0_i32_4 = arith.constant 0 : i32
    %7 = arith.cmpi ne, %arg0, %c0_i32_4 : i32
    %8 = arith.extui %7 : i1 to i32
    %c0_i32_5 = arith.constant 0 : i32
    %9 = arith.cmpi ne, %8, %c0_i32_5 : i32
    scf.if %9 {
      %c0_8 = arith.constant 0 : index
      %c0_9 = arith.constant 0 : index
      %13 = vector.load %arg6[%c0_8, %c0_9] : memref<2x1024xf32, #tpu.memory_space<vmem>>, vector<2x1024xf32>
      %14 = arith.addf %13, %3 : vector<2x1024xf32>
      %c0_10 = arith.constant 0 : index
      %c0_11 = arith.constant 0 : index
      %15 = vector.load %arg6[%c0_10, %c0_11] : memref<2x1024xf32, #tpu.memory_space<vmem>>, vector<2x1024xf32>
      tpu.vector_store %arg6[%c0_10, %c0_11], %14 {strides = array<i32>} : memref<2x1024xf32, #tpu.memory_space<vmem>>, vector<2x1024xf32>,
    } else {
    }
    %c0_i32_6 = arith.constant 0 : i32
    %10 = arith.cmpi eq, %arg0, %c0_i32_6 : i32
    %11 = arith.extui %10 : i1 to i32
    %c0_i32_7 = arith.constant 0 : i32
    %12 = arith.cmpi ne, %11, %c0_i32_7 : i32
    scf.if %12 {
      %c0_8 = arith.constant 0 : index
      %c0_9 = arith.constant 0 : index
      %13 = vector.load %arg6[%c0_8, %c0_9] : memref<2x1024xf32, #tpu.memory_space<vmem>>, vector<2x1024xf32>
      %14 = vector.shape_cast %13 : vector<2x1024xf32> to vector<1x2x1024xf32>
      %cst = arith.constant dense<0.000000e+00> : vector<1xf32>
      %15 = vector.multi_reduction <add>, %14, %cst [1, 2] : vector<1x2x1024xf32> to vector<1xf32>
      %16 = vector.shape_cast %15 : vector<1xf32> to vector<1x1x1xf32>
      %17 = vector.extract %16[0, 0, 0] : f32 from vector<1x1x1xf32>
      %c0_10 = arith.constant 0 : index
      %c0_11 = arith.constant 0 : index
      %18 = vector.load %arg3[%c0_10, %c0_11] : memref<2x11xf32, #tpu.memory_space<vmem>>, vector<2x11xf32>
      %c0_12 = arith.constant 0 : index
      %c0_13 = arith.constant 0 : index
      %19 = vector.load %arg4[%c0_12, %c0_13] : memref<2x11xf32, #tpu.memory_space<vmem>>, vector<2x11xf32>
      %cst_14 = arith.constant 0.000000e+00 : f32
      %20 = vector.broadcast %cst_14 : f32 to vector<2x11xf32>
      %21 = arith.maximumf %18, %20 : vector<2x11xf32>
      %22 = arith.mulf %18, %19 : vector<2x11xf32>
      %23 = arith.subf %21, %22 : vector<2x11xf32>
      %24 = math.absf %18 : vector<2x11xf32>
      %cst_15 = arith.constant 0.000000e+00 : f32
      %25 = vector.broadcast %cst_15 : f32 to vector<2x11xf32>
      %26 = arith.subf %25, %24 : vector<2x11xf32>
      %27 = math.exp %26 : vector<2x11xf32>
      %28 = math.log1p %27 : vector<2x11xf32>
      %29 = arith.addf %23, %28 : vector<2x11xf32>
      %30 = vector.shape_cast %29 : vector<2x11xf32> to vector<1x2x11xf32>
      %cst_16 = arith.constant dense<0.000000e+00> : vector<1xf32>
      %31 = vector.multi_reduction <add>, %30, %cst_16 [1, 2] : vector<1x2x11xf32> to vector<1xf32>
      %32 = vector.shape_cast %31 : vector<1xf32> to vector<1x1x1xf32>
      %33 = vector.extract %32[0, 0, 0] : f32 from vector<1x1x1xf32>
      %cst_17 = arith.constant 4.8828125E-4 : f32
      %34 = arith.mulf %cst_17, %17 : f32
      %cst_18 = arith.constant 0.0454545468 : f32
      %35 = arith.mulf %cst_18, %33 : f32
      %36 = arith.addf %34, %35 : f32
      %c0_19 = arith.constant 0 : index
      %c0_20 = arith.constant 0 : index
      %37 = memref.load %arg5[%c0_19, %c0_20] : memref<1x1xf32, #tpu.memory_space<smem>>
      memref.store %36, %arg5[%c0_19, %c0_20] : memref<1x1xf32, #tpu.memory_space<smem>>
    } else {
    }
    return
  }
  func.func @transform_0(%arg0: i32) -> (i32, i32) {
    %c0_i32 = arith.constant 0 : i32
    %c0_i32_0 = arith.constant 0 : i32
    return %arg0, %c0_i32 : i32, i32
  }
  func.func @transform_1(%arg0: i32) -> (i32, i32) {
    %c0_i32 = arith.constant 0 : i32
    %c0_i32_0 = arith.constant 0 : i32
    return %arg0, %c0_i32 : i32, i32
  }
  func.func @transform_2(%arg0: i32) -> (i32, i32) {
    %c0_i32 = arith.constant 0 : i32
    %c0_i32_0 = arith.constant 0 : i32
    %c0_i32_1 = arith.constant 0 : i32
    return %c0_i32, %c0_i32_0 : i32, i32
  }
  func.func @transform_3(%arg0: i32) -> (i32, i32) {
    %c0_i32 = arith.constant 0 : i32
    %c0_i32_0 = arith.constant 0 : i32
    %c0_i32_1 = arith.constant 0 : i32
    return %c0_i32, %c0_i32_0 : i32, i32
  }
  func.func @transform_4(%arg0: i32) -> (i32, i32) {
    %c0_i32 = arith.constant 0 : i32
    %c0_i32_0 = arith.constant 0 : i32
    %c0_i32_1 = arith.constant 0 : i32
    return %c0_i32, %c0_i32_0 : i32, i32
  }
}

</mosaic_0001>

<llo_original>
// kernel: tpu_custom_call.1
$region0: #{tpu_custom_call.1}
  #allocation0 [shape = 'u32[]', space=smem, size = 0x4, offset = 0x4, fixed_abs, tag = 'smem constant byte address 0x4 - core index']
  #allocation1 [shape = 'u32[144,128]{1,0:T(1,128)}', space=vmem, size = 0x12000, scoped, tag = 'internal scratch']
  #allocation2 [shape = 'f32[2,1024]{1,0:T(2,128)}', space=vmem, size = 0x2000, scoped, tag = 'scratch operand']
  %s0 = inlined_call_operand.hbm [shape: f32[2,1024], index: 0, kind: input, shape index: {}]
  %s1 = inlined_call_operand.hbm [shape: f32[2,1024], index: 1, kind: input, shape index: {}]
  %s2 = inlined_call_operand.vmem [shape: f32[2,11], index: 2, kind: input, shape index: {}]
  %s3 = inlined_call_operand.vmem [shape: f32[2,11], index: 3, kind: input, shape index: {}]
  %s4 = inlined_call_operand.hbm [shape: f32[1,1], index: 4, kind: output, shape index: {}]
  %s5 = sld [smem:[#allocation0]]
  $region46: #{tpu_custom_call.1} parent=0
    _
  %s7 = ssub.s32 1, %s5
  %s8 = scalar_select 0, %s7, %s5
  $region1: #{tpu_custom_call.1} parent=0
    #allocation3 [shape = 'u8[8192]{0}', space=vmem, size = 0x2000, scoped, tag = 'input window, operand 0, single buffered']
    #allocation4 [shape = 's32[1]{0}', space=sflag, size = 0x4, scoped, tag = 'scoped memory for tpu_custom_call.1']
    #allocation5 [shape = 's32[1]{0}', space=sflag, size = 0x4, scoped, tag = 'scoped memory for tpu_custom_call.1']
    #allocation6 [shape = 'u8[8192]{0}', space=vmem, size = 0x2000, scoped, tag = 'input window, operand 1, single buffered']
    #allocation7 [shape = 's32[1]{0}', space=sflag, size = 0x4, scoped, tag = 'scoped memory for tpu_custom_call.1']
    #allocation8 [shape = 'u8[512]{0}', space=smem, size = 0x200, scoped, tag = 'output window, operand 0, single buffered']
    %9 = vsyncpa [#allocation4], 0
    %10 = vsyncpa [#allocation7], 0
    %11 = vsyncpa [#allocation5], 0
    // Predicated region
    $region2: #{tpu_custom_call.1} parent=1 // pred_check
      _
    $region3: #{tpu_custom_call.1} parent=1 // pred_check_branch
      %13 = sbr.rel (0) target = $region5
    $region4: #{tpu_custom_call.1} parent=1 // pred_region
      %s15 = ssub.s32 256, 256
      %16 = vsyncadd [#allocation4], %s15
      %s18 = sshll.u32 [#allocation3], 4
      %s19 = int_to_ptr.vmem [resolvable:$true] %s18
      %21 = dma.hbm_to_vmem [thread:$0]  %s0, 256, %s19, [#allocation4]
    $region5: #{tpu_custom_call.1} parent=1 // pred_fallthru
      _
    // Predicated region
    $region6: #{tpu_custom_call.1} parent=1 // pred_check
      _
    $region7: #{tpu_custom_call.1} parent=1 // pred_check_branch
      %23 = sbr.rel (0) target = $region9
    $region8: #{tpu_custom_call.1} parent=1 // pred_region
      %s25 = ssub.s32 256, 256
      %26 = vsyncadd [#allocation7], %s25
      %s28 = sshll.u32 [#allocation6], 4
      %s29 = int_to_ptr.vmem [resolvable:$true] %s28
      %31 = dma.hbm_to_vmem [thread:$0]  %s1, 256, %s29, [#allocation7]
    $region9: #{tpu_custom_call.1} parent=1 // pred_fallthru
      _
    // Predicated region
    $region10: #{tpu_custom_call.1} parent=1 // pred_check
      _
    $region11: #{tpu_custom_call.1} parent=1 // pred_check_branch
      %33 = sbr.rel (0) target = $region13
    $region12: #{tpu_custom_call.1} parent=1 // pred_region
      _
    $region13: #{tpu_custom_call.1} parent=1 // pred_fallthru
      _
    // Predicated region
    $region14: #{tpu_custom_call.1} parent=1 // pred_check
      _
    $region15: #{tpu_custom_call.1} parent=1 // pred_check_branch
      %35 = sbr.rel (0) target = $region17
    $region16: #{tpu_custom_call.1} parent=1 // pred_region
      _
    $region17: #{tpu_custom_call.1} parent=1 // pred_fallthru
      _
    // Predicated region
    $region18: #{tpu_custom_call.1} parent=1 // pred_check
      _
    $region19: #{tpu_custom_call.1} parent=1 // pred_check_branch
      %37 = sbr.rel (0) target = $region21
    $region20: #{tpu_custom_call.1} parent=1 // pred_region
      %38 = dma.done [#allocation4], 256
    $region21: #{tpu_custom_call.1} parent=1 // pred_fallthru
      _
    // Predicated region
    $region22: #{tpu_custom_call.1} parent=1 // pred_check
      _
    $region23: #{tpu_custom_call.1} parent=1 // pred_check_branch
      %40 = sbr.rel (0) target = $region25
    $region24: #{tpu_custom_call.1} parent=1 // pred_region
      %41 = dma.done [#allocation7], 256
    $region25: #{tpu_custom_call.1} parent=1 // pred_fallthru
      _
    %v42 = vld [vmem:[#allocation3] sm:$0xff]
    %v43 = vld [vmem:[#allocation3 + $0x8] sm:$0xff]
    %v44 = vld [vmem:[#allocation6] sm:$0xff]
    %v45 = vld [vmem:[#allocation6 + $0x8] sm:$0xff]
    %v46 = vsub.f32 %v42, %v44
    %v47 = vsub.f32 %v43, %v45
    %v48 = vmul.f32 %v46, %v46
    %v49 = vmul.f32 %v47, %v47
    %p50 = scmp.eq.s32.totalorder 0, 0
    // Predicated region
    $region26: #{tpu_custom_call.1} parent=1 // pred_check
      %p51 = pneg %p50
    $region27: #{tpu_custom_call.1} parent=1 // pred_check_branch
      %53 = sbr.rel (%p51) target = $region29
    $region28: #{tpu_custom_call.1} parent=1 // pred_region
      %54 = vst [vmem:[#allocation2] sm:$0xff] %v48
      %55 = vst [vmem:[#allocation2 + $0x8] sm:$0xff] %v49
    $region29: #{tpu_custom_call.1} parent=1 // pred_fallthru
      _
    %p56 = scmp.ne.s32.totalorder 0, 0
    // Predicated region
    $region30: #{tpu_custom_call.1} parent=1 // pred_check
      %p57 = pneg %p56
    $region31: #{tpu_custom_call.1} parent=1 // pred_check_branch
      %59 = sbr.rel (%p57) target = $region33
    $region32: #{tpu_custom_call.1} parent=1 // pred_region
      %v60 = vld [vmem:[#allocation2] sm:$0xff]
      %v61 = vld [vmem:[#allocation2 + $0x8] sm:$0xff]
      %v62 = vadd.f32 %v60, %v48
      %v63 = vadd.f32 %v61, %v49
      %64 = vst [vmem:[#allocation2] sm:$0xff] %v62
      %65 = vst [vmem:[#allocation2 + $0x8] sm:$0xff] %v63
    $region33: #{tpu_custom_call.1} parent=1 // pred_fallthru
      _
    // Predicated region
    $region34: #{tpu_custom_call.1} parent=1 // pred_check
      %p66 = pneg %p50
    $region35: #{tpu_custom_call.1} parent=1 // pred_check_branch
      %68 = sbr.rel (%p66) target = $region37
    $region36: #{tpu_custom_call.1} parent=1 // pred_region
      %v69 = vld [vmem:[#allocation2] sm:$0xff]
      %v70 = vld [vmem:[#allocation2 + $0x8] sm:$0xff]
      %v73 = vcombine.high %v69, %v69
      %v75 = vunpack.c.l.s4 1983009808
      %v76 = vunpack.c.0.s8 %v75
      %v77 = vlaneseq
      %v78 = vshrl.u32 %v77, 7
      %v79 = vsub.s32 %v76, %v78
      %v80 = vrot.slane %v69, %v79
      %v82 = vunpack.c.l.s4 1983009808
      %v83 = vunpack.c.0.s8 %v82
      %v84 = vlaneseq
      %v85 = vshrl.u32 %v84, 7
      %v86 = vsub.s32 %v83, %v85
      %v87 = vrot.slane %v73, %v86
      %v88 = vcombine.high %v80, %v80
      %v89 = vcombine.high %v87, %v87
      %v90 = vcombine.high %v70, %v70
      %v92 = vunpack.c.l.s4 1983009808
      %v93 = vunpack.c.0.s8 %v92
      %v94 = vlaneseq
      %v95 = vshrl.u32 %v94, 7
      %v96 = vsub.s32 %v93, %v95
      %v97 = vrot.slane %v70, %v96
      %v99 = vunpack.c.l.s4 1983009808
      %v100 = vunpack.c.0.s8 %v99
      %v101 = vlaneseq
      %v102 = vshrl.u32 %v101, 7
      %v103 = vsub.s32 %v100, %v102
      %v104 = vrot.slane %v90, %v103
      %v105 = vcombine.high %v97, %v97
      %v106 = vcombine.high %v104, %v104
      %vm115 = vcmask 1041408
      %v116 = vsel %vm115, %v80, 0.0
      %v117 = vsel %vm115, %v88, 0.0
      %v118 = vadd.f32 %v116, %v117
      %v119 = vsel %vm115, %v87, 0.0
      %v120 = vadd.f32 %v118, %v119
      %v121 = vsel %vm115, %v89, 0.0
      %v122 = vadd.f32 %v120, %v121
      %v123 = vsel %vm115, %v97, 0.0
      %v124 = vadd.f32 %v122, %v123
      %v125 = vsel %vm115, %v105, 0.0
      %v126 = vadd.f32 %v124, %v125
      %v127 = vsel %vm115, %v104, 0.0
      %v128 = vadd.f32 %v126, %v127
      %v129 = vsel %vm115, %v106, 0.0
      %v130 = vadd.f32 %v128, %v129
      %131 = vadd.xlane.f32.xlu0 %v130
      %v132 = vpop.xlane.xlu0 %131
      %v133 = vrot.slane %v132, 4
      %v134 = vadd.f32 %v132, %v133
      %v135 = vrot.slane %v134, 2
      %v136 = vadd.f32 %v134, %v135
      %v137 = vrot.slane %v136, 1
      %v138 = vadd.f32 %v136, %v137
      %s139 = vtos %v138
      %v140 = vld [vmem:[%s2] sm:$0x3]
      %v141 = vld [vmem:[%s3] sm:$0x3]
      %v142 = vmax.f32 %v140, 0.0
      %v143 = vmul.f32 %v140, %v141
      %v144 = vsub.f32 %v142, %v143
      %v145 = vand.u32 2147483647, %v140
      %v146 = vsub.f32 0.0, %v145
      %v147 = vmul.f32 %v146, 1.442695
      %v148 = vpow.pop %v147
      %v149 = vadd.f32 %v148, 1.0
      %v150 = vlog2.pop %v149
      %v151 = vmul.f32 %v150, 0.6931472
      %v152 = vmul.f32 -0.5, %v148
      %v153 = vadd.f32 %v152, 1.0
      %v154 = vmul.f32 %v153, %v148
      %v155 = vand.u32 2147483647, %v148
      %vm156 = vcmp.lt.f32.partialorder %v155, 0.0004427343
      %v157 = vsel %vm156, %v154, %v151
      %v158 = vadd.f32 %v144, %v157
      %vm159 = vcmask 82944
      %v160 = vsel %vm159, %v158, 0.0
      %161 = vadd.xlane.f32.xlu0 %v160
      %v162 = vpop.xlane.xlu0 %161
      %v163 = vrot.slane %v162, 4
      %v164 = vadd.f32 %v162, %v163
      %v165 = vrot.slane %v164, 2
      %v166 = vadd.f32 %v164, %v165
      %v167 = vrot.slane %v166, 1
      %v168 = vadd.f32 %v166, %v167
      %s169 = vtos %v168
      %s170 = smul.f32 %s139, 0.00048828125
      %s171 = smul.f32 %s169, 0.045454547
      %s172 = sadd.f32 %s170, %s171
      %s173 = scalar_lea.smem [#allocation8], 0
      %174 = sst [smem:[%s173]] %s172
    $region37: #{tpu_custom_call.1} parent=1 // pred_fallthru
      _
    // Predicated region
    $region38: #{tpu_custom_call.1} parent=1 // pred_check
      _
    $region39: #{tpu_custom_call.1} parent=1 // pred_check_branch
      %176 = sbr.rel (0) target = $region41
    $region40: #{tpu_custom_call.1} parent=1 // pred_region
      %s178 = ssub.s32 16, 16
      %179 = vsyncadd [#allocation5], %s178
      %182 = dma.smem_to_hbm [#allocation8], 16, %s4, [#allocation5]
    $region41: #{tpu_custom_call.1} parent=1 // pred_fallthru
      _
    // Predicated region
    $region42: #{tpu_custom_call.1} parent=1 // pred_check
      _
    $region43: #{tpu_custom_call.1} parent=1 // pred_check_branch
      %184 = sbr.rel (0) target = $region45
    $region44: #{tpu_custom_call.1} parent=1 // pred_region
      %185 = dma.done [#allocation5], 16
    $region45: #{tpu_custom_call.1} parent=1 // pred_fallthru
      _
    %186 = sfence
    %187 = vsyncpa [#allocation4], 1
    %188 = vsyncpa [#allocation7], 1
    %189 = vsyncpa [#allocation5], 1

</llo_original>
